<compile_context>
chip_gen: v7x
topology: tpu7x:2x2x1
jax: 0.10.0
libtpu: 0.0.40
codegen_flags: <defaults>
</compile_context>

<pallas_src>
import jax
import jax.numpy as jnp
from jax.experimental import pallas as pl
from jax.experimental.pallas import tpu as pltpu


# ---------------------------------------------------------------------------
# Fused single-pass kernel: pool + excitation + rescale on a (Bb, C, HW) block.
# ---------------------------------------------------------------------------
def _se_fused_kernel(x_ref, w1_ref, w2_ref, o_ref):
    # x_ref / o_ref: (Bb, C, HW) -- HW on the lane axis.
    # Squeeze: per-batch, per-channel mean over spatial, accumulated in f32.
    y = jnp.mean(x_ref[...].astype(jnp.float32), axis=-1)                  # (Bb, C)
    # Excitation: Linear(C -> C//r, no bias) + ReLU, Linear(C//r -> C) + Sigmoid.
    h = jnp.maximum(jnp.dot(y, w1_ref[...], preferred_element_type=jnp.float32), 0.0)
    s = jax.nn.sigmoid(jnp.dot(h, w2_ref[...], preferred_element_type=jnp.float32))
    # Scale: re-read the slab (short live range); multiply in the input dtype
    # (bf16 VALU on v6e/v7x), gate cast exactly once.
    o_ref[...] = x_ref[...] * s.astype(o_ref.dtype)[:, :, None]


# ---------------------------------------------------------------------------
# Two-pass tiled fallback kernels (for slabs too large to double-buffer).
# ---------------------------------------------------------------------------
def _make_sum_kernel(hw, thw):
    needs_mask = (hw % thw) != 0

    def kernel(x_ref, sum_ref):
        j = pl.program_id(1)

        @pl.when(j == 0)
        def _():
            sum_ref[...] = jnp.zeros_like(sum_ref)

        part = x_ref[...].astype(jnp.float32)                    # (1, C, THW)
        if needs_mask:
            col = jax.lax.broadcasted_iota(jnp.int32, part.shape, 2)
            part = jnp.where(col < (hw - j * thw), part, 0.0)
        sum_ref[...] += jnp.sum(part, axis=-1, keepdims=True)    # (1, C, 1)

    return kernel


def _se_scale_kernel(x_ref, s_ref, o_ref):
    # x_ref/o_ref: (1, C, THW); s_ref: (1, C, 1) already in the output dtype.
    o_ref[...] = x_ref[...] * s_ref[...]


# ---------------------------------------------------------------------------
# Wrapper
# ---------------------------------------------------------------------------
def _is_v7x():
    try:
        return "7" in jax.devices()[0].device_kind
    except Exception:
        return False


def _vmem_capacity_bytes():
    try:
        return int(pltpu.get_tpu_info().vmem_capacity_bytes)
    except Exception:
        return 64 << 20  # conservative default: v7x per-TensorCore VMEM


def se_layer(x, w1, w2, *, max_vmem_bytes=None):
    """SELayer forward.

    x:  (B, C, H, W)
    w1: (C, C//r)  = fc1.weight.T  (PyTorch Linear stores (out, in))
    w2: (C//r, C)  = fc2.weight.T
    """
    B, C, H, W = x.shape
    HW = H * W
    xr = x.reshape(B, C, HW)                      # free reshape, no HBM copy
    itemsize = jnp.dtype(x.dtype).itemsize
    slab_bytes = C * HW * itemsize
    w_bytes = w1.size * w1.dtype.itemsize + w2.size * w2.dtype.itemsize
    is_v7 = _is_v7x()

    # Generation-aware VMEM budget with headroom (never ask for all of it).
    if max_vmem_bytes is None:
        cap = max(_vmem_capacity_bytes() - (12 << 20), 32 << 20)
    else:
        cap = int(max_vmem_bytes)

    def _vmem_kwargs(est):
        # Only set the scoped limit when the estimate exceeds the platform
        # defaults (16 MiB v5e / 32 MiB v6e+); never lower it below 32 MiB.
        if est > (16 << 20):
            return {"vmem_limit_bytes": int(min(max(est, 32 << 20), cap))}
        return {}

    # --- fused single-HBM-pass path --------------------------------------
    target_block = (3 << 20) if is_v7 else (6 << 20)
    bb = max(1, min(B, target_block // max(slab_bytes, 1)))

    def fused_est(b):
        # 2 input + 2 output double buffers of one block, 2x each weight.
        return 4 * b * slab_bytes + 2 * w_bytes + (256 << 10)

    while bb > 1 and fused_est(bb) > cap:
        bb -= 1

    if fused_est(bb) <= cap:
        nb = -(-B // bb)
        b_sem = pltpu.CORE_PARALLEL if (is_v7 and nb >= 2) else pltpu.PARALLEL
        out = pl.pallas_call(
            _se_fused_kernel,
            out_shape=jax.ShapeDtypeStruct((B, C, HW), x.dtype),
            grid=(nb,),
            in_specs=[
                pl.BlockSpec((bb, C, HW), lambda i: (i, 0, 0)),
                pl.BlockSpec(w1.shape, lambda i: (0, 0)),  # constant -> no re-DMA
                pl.BlockSpec(w2.shape, lambda i: (0, 0)),
            ],
            out_specs=pl.BlockSpec((bb, C, HW), lambda i: (i, 0, 0)),
            compiler_params=pltpu.CompilerParams(
                dimension_semantics=(b_sem,), **_vmem_kwargs(fused_est(bb))),
        )(xr, w1, w2)
        return out.reshape(B, C, H, W)

    # --- two-pass tiled fallback ------------------------------------------
    # Spatial tile: full HW if it fits, else a 128-aligned lane tile.
    per_col = C * itemsize
    budget = max(cap - (1 << 20), 4 * 128 * per_col)
    max_cols = budget // (4 * per_col)
    thw = HW if max_cols >= HW else max(128, int(max_cols) // 128 * 128)
    n_hw = -(-HW // thw)
    tile_est = 4 * C * thw * itemsize + (256 << 10)
    b_sem = pltpu.CORE_PARALLEL if (is_v7 and B >= 2) else pltpu.PARALLEL

    # Pass 1: per-(b, c) channel sums accumulated across spatial tiles.
    sums = pl.pallas_call(
        _make_sum_kernel(HW, thw),
        out_shape=jax.ShapeDtypeStruct((B, C, 1), jnp.float32),
        grid=(B, n_hw),
        in_specs=[pl.BlockSpec((1, C, thw), lambda i, j: (i, 0, j))],
        out_specs=pl.BlockSpec((1, C, 1), lambda i, j: (i, 0, 0)),
        compiler_params=pltpu.CompilerParams(
            dimension_semantics=(b_sem, pltpu.ARBITRARY),
            **_vmem_kwargs(tile_est)),
    )(xr)

    # Tiny excitation FCs on the (B, C) pooled vector -- negligible next to
    # the HBM stream, kept as plain jnp between the two Pallas passes.
    y = sums[:, :, 0] * (1.0 / float(HW))
    h = jnp.maximum(y @ w1.astype(jnp.float32), 0.0)
    s = jax.nn.sigmoid(h @ w2.astype(jnp.float32)).astype(x.dtype)
    s = s.reshape(B, C, 1)

    # Pass 2: rescale spatial tiles by the per-(b, c) gate.
    out = pl.pallas_call(
        _se_scale_kernel,
        out_shape=jax.ShapeDtypeStruct((B, C, HW), x.dtype),
        grid=(B, n_hw),
        in_specs=[
            pl.BlockSpec((1, C, thw), lambda i, j: (i, 0, j)),
            pl.BlockSpec((1, C, 1), lambda i, j: (i, 0, 0)),
        ],
        out_specs=pl.BlockSpec((1, C, thw), lambda i, j: (i, 0, j)),
        compiler_params=pltpu.CompilerParams(
            dimension_semantics=(b_sem, pltpu.PARALLEL),
            **_vmem_kwargs(tile_est)),
    )(xr, s)
    return out.reshape(B, C, H, W)


def se_layer_ref(x, w1, w2):
    """Pure-JAX reference matching the PyTorch module semantics."""
    y = jnp.mean(x, axis=(2, 3))              # AdaptiveAvgPool2d(1).view(b, c)
    y = jnp.maximum(y @ w1, 0.0)              # Linear(no bias) + ReLU
    y = jax.nn.sigmoid(y @ w2)                # Linear(no bias) + Sigmoid
    return x * y[:, :, None, None]


if __name__ == "__main__":
    # SELayer(channel=32, reduction=16) -> hidden = 32 // 16 = 2
    B, C, H, W = 2, 32, 16, 16
    reduction = 16
    hidden = max(1, C // reduction)

    key = jax.random.PRNGKey(0)
    kx, k1, k2, kx2 = jax.random.split(key, 4)

    x = jax.random.normal(kx, (B, C, H, W), dtype=jnp.float32)
    # PyTorch Linear stores (out, in); we keep the transposed (in, out) form so
    # the kernel computes y @ w directly.
    w1 = jax.random.normal(k1, (C, hidden), dtype=jnp.float32) * 0.1  # fc1.weight.T
    w2 = jax.random.normal(k2, (hidden, C), dtype=jnp.float32) * 0.1  # fc2.weight.T

    # Fused single-pass path (default).
    out = jax.block_until_ready(se_layer(x, w1, w2))
    ref = se_layer_ref(x, w1, w2)
    assert out.shape == (B, C, H, W)
    assert jnp.allclose(out, ref, atol=1e-5, rtol=1e-5), "fused path mismatch"

    # Also exercise the two-pass tiled fallback (forced via a tiny VMEM budget,
    # with a non-128-multiple spatial size so the tail-mask path runs).
    x2 = jax.random.normal(kx2, (B, C, 20, 20), dtype=jnp.float32)
    out2 = jax.block_until_ready(se_layer(x2, w1, w2, max_vmem_bytes=128 << 10))
    ref2 = se_layer_ref(x2, w1, w2)
    assert out2.shape == x2.shape
    assert jnp.allclose(out2, ref2, atol=1e-5, rtol=1e-5), "two-pass path mismatch"

    print("KERNEL_OK")
</pallas_src>

<mosaic_0001>
module attributes {stable_mosaic.version = 11 : i64} {
  func.func @_se_fused_kernel(%arg0: i32, %arg1: memref<2x32x256xf32, #tpu.memory_space<vmem>>, %arg2: memref<32x2xf32, #tpu.memory_space<vmem>>, %arg3: memref<2x32xf32, #tpu.memory_space<vmem>>, %arg4: memref<2x32x256xf32, #tpu.memory_space<vmem>>) attributes {dimension_semantics = [#tpu.dimension_semantics<parallel>], iteration_bounds = array<i64: 1>, scalar_prefetch = 0 : i64, scratch_operands = 0 : i64, tpu.core_type = #tpu.core_type<tc>, window_params = [{transform_indices = @transform_0, window_bounds = array<i64: 2, 32, 256>}, {pipeline_mode = #tpu.pipeline_mode<synchronous>, transform_indices = @transform_1, window_bounds = array<i64: 32, 2>}, {pipeline_mode = #tpu.pipeline_mode<synchronous>, transform_indices = @transform_2, window_bounds = array<i64: 2, 32>}, {transform_indices = @transform_3, window_bounds = array<i64: 2, 32, 256>}]} {
    %c0 = arith.constant 0 : index
    %c0_0 = arith.constant 0 : index
    %c0_1 = arith.constant 0 : index
    %0 = vector.load %arg1[%c0, %c0_0, %c0_1] : memref<2x32x256xf32, #tpu.memory_space<vmem>>, vector<2x32x256xf32>
    %cst = arith.constant dense<0.000000e+00> : vector<2x32xf32>
    %1 = vector.multi_reduction <add>, %0, %cst [2] : vector<2x32x256xf32> to vector<2x32xf32>
    %cst_2 = arith.constant 2.560000e+02 : f32
    %2 = vector.broadcast %cst_2 : f32 to vector<2x32xf32>
    %3 = arith.divf %1, %2 : vector<2x32xf32>
    %c0_3 = arith.constant 0 : index
    %c0_4 = arith.constant 0 : index
    %4 = vector.load %arg2[%c0_3, %c0_4] : memref<32x2xf32, #tpu.memory_space<vmem>>, vector<32x2xf32>
    %cst_5 = arith.constant dense<0.000000e+00> : vector<2x2xf32>
    %5 = tpu.matmul %3, %4, %cst_5 {dimension_numbers = #tpu.dot_dimension_numbers<[1], [0], [0], [1], [0, 0, 1, 1], [], []>} : vector<2x32xf32>, vector<32x2xf32>, vector<2x2xf32> -> vector<2x2xf32>
    %cst_6 = arith.constant 0.000000e+00 : f32
    %6 = vector.broadcast %cst_6 : f32 to vector<2x2xf32>
    %7 = arith.maximumf %5, %6 : vector<2x2xf32>
    %c0_7 = arith.constant 0 : index
    %c0_8 = arith.constant 0 : index
    %8 = vector.load %arg3[%c0_7, %c0_8] : memref<2x32xf32, #tpu.memory_space<vmem>>, vector<2x32xf32>
    %cst_9 = arith.constant dense<0.000000e+00> : vector<2x32xf32>
    %9 = tpu.matmul %7, %8, %cst_9 {dimension_numbers = #tpu.dot_dimension_numbers<[1], [0], [0], [1], [0, 0, 1, 1], [], []>} : vector<2x2xf32>, vector<2x32xf32>, vector<2x32xf32> -> vector<2x32xf32>
    %10 = arith.negf %9 : vector<2x32xf32>
    %11 = math.exp %10 : vector<2x32xf32>
    %cst_10 = arith.constant 1.000000e+00 : f32
    %12 = vector.broadcast %cst_10 : f32 to vector<2x32xf32>
    %13 = arith.addf %12, %11 : vector<2x32xf32>
    %14 = arith.divf %12, %13 : vector<2x32xf32>
    %c0_11 = arith.constant 0 : index
    %c0_12 = arith.constant 0 : index
    %c0_13 = arith.constant 0 : index
    %15 = vector.load %arg1[%c0_11, %c0_12, %c0_13] : memref<2x32x256xf32, #tpu.memory_space<vmem>>, vector<2x32x256xf32>
    %16 = vector.shape_cast %14 : vector<2x32xf32> to vector<2x32x1xf32>
    %17 = vector.broadcast %16 : vector<2x32x1xf32> to vector<2x32x256xf32>
    %18 = arith.mulf %15, %17 : vector<2x32x256xf32>
    %c0_14 = arith.constant 0 : index
    %c0_15 = arith.constant 0 : index
    %c0_16 = arith.constant 0 : index
    %19 = vector.load %arg4[%c0_14, %c0_15, %c0_16] : memref<2x32x256xf32, #tpu.memory_space<vmem>>, vector<2x32x256xf32>
    tpu.vector_store %arg4[%c0_14, %c0_15, %c0_16], %18 {strides = array<i32>} : memref<2x32x256xf32, #tpu.memory_space<vmem>>, vector<2x32x256xf32>,
    return
  }
  func.func @transform_0(%arg0: i32) -> (i32, i32, i32) {
    %c0_i32 = arith.constant 0 : i32
    %c0_i32_0 = arith.constant 0 : i32
    %c0_i32_1 = arith.constant 0 : i32
    return %arg0, %c0_i32, %c0_i32_0 : i32, i32, i32
  }
  func.func @transform_1(%arg0: i32) -> (i32, i32) {
    %c0_i32 = arith.constant 0 : i32
    %c0_i32_0 = arith.constant 0 : i32
    %c0_i32_1 = arith.constant 0 : i32
    return %c0_i32, %c0_i32_0 : i32, i32
  }
  func.func @transform_2(%arg0: i32) -> (i32, i32) {
    %c0_i32 = arith.constant 0 : i32
    %c0_i32_0 = arith.constant 0 : i32
    %c0_i32_1 = arith.constant 0 : i32
    return %c0_i32, %c0_i32_0 : i32, i32
  }
  func.func @transform_3(%arg0: i32) -> (i32, i32, i32) {
    %c0_i32 = arith.constant 0 : i32
    %c0_i32_0 = arith.constant 0 : i32
    %c0_i32_1 = arith.constant 0 : i32
    return %arg0, %c0_i32, %c0_i32_0 : i32, i32, i32
  }
}

</mosaic_0001>

<llo_original>
// kernel: tpu_custom_call.1
$region0: #{tpu_custom_call.1}
  #allocation0 [shape = 'u32[]', space=smem, size = 0x4, offset = 0x4, fixed_abs, tag = 'smem constant byte address 0x4 - core index']
  #allocation1 [shape = 'u32[144,128]{1,0:T(1,128)}', space=vmem, size = 0x12000, scoped, tag = 'internal scratch']
  %s0 = inlined_call_operand.hbm [shape: f32[2,32,256], index: 0, kind: input, shape index: {}]
  %s1 = inlined_call_operand.vmem [shape: f32[32,2], index: 1, kind: input, shape index: {}]
  %s2 = inlined_call_operand.vmem [shape: f32[2,32], index: 2, kind: input, shape index: {}]
  %s3 = inlined_call_operand.hbm [shape: f32[2,32,256], index: 3, kind: output, shape index: {}]
  %s4 = sld [smem:[#allocation0]]
  $region26: #{tpu_custom_call.1} parent=0
    _
  %s6 = ssub.s32 1, %s4
  %s7 = scalar_select 0, %s6, %s4
  $region1: #{tpu_custom_call.1} parent=0
    #allocation2 [shape = 'u8[65536]{0}', space=vmem, size = 0x10000, scoped, tag = 'input window, operand 0, single buffered']
    #allocation3 [shape = 's32[1]{0}', space=sflag, size = 0x4, scoped, tag = 'scoped memory for tpu_custom_call.1']
    #allocation4 [shape = 's32[1]{0}', space=sflag, size = 0x4, scoped, tag = 'scoped memory for tpu_custom_call.1']
    #allocation5 [shape = 'u8[65536]{0}', space=vmem, size = 0x10000, scoped, tag = 'output window, operand 0, single buffered']
    %8 = vsyncpa [#allocation3], 0
    %9 = vsyncpa [#allocation4], 0
    // Predicated region
    $region2: #{tpu_custom_call.1} parent=1 // pred_check
      _
    $region3: #{tpu_custom_call.1} parent=1 // pred_check_branch
      %11 = sbr.rel (0) target = $region5
    $region4: #{tpu_custom_call.1} parent=1 // pred_region
      %s13 = ssub.s32 2048, 2048
      %14 = vsyncadd [#allocation3], %s13
      %s15 = sshll.u32 [#allocation2], 4
      %s16 = int_to_ptr.vmem [resolvable:$true] %s15
      %21 = dma.hbm_to_vmem [thread:$0]  %s0, 2048, %s16, [#allocation3], 256, 256, 16
    $region5: #{tpu_custom_call.1} parent=1 // pred_fallthru
      _
    // Predicated region
    $region6: #{tpu_custom_call.1} parent=1 // pred_check
      _
    $region7: #{tpu_custom_call.1} parent=1 // pred_check_branch
      %23 = sbr.rel (0) target = $region9
    $region8: #{tpu_custom_call.1} parent=1 // pred_region
      _
    $region9: #{tpu_custom_call.1} parent=1 // pred_fallthru
      _
    // Predicated region
    $region10: #{tpu_custom_call.1} parent=1 // pred_check
      _
    $region11: #{tpu_custom_call.1} parent=1 // pred_check_branch
      %25 = sbr.rel (0) target = $region13
    $region12: #{tpu_custom_call.1} parent=1 // pred_region
      _
    $region13: #{tpu_custom_call.1} parent=1 // pred_fallthru
      _
    // Predicated region
    $region14: #{tpu_custom_call.1} parent=1 // pred_check
      _
    $region15: #{tpu_custom_call.1} parent=1 // pred_check_branch
      %27 = sbr.rel (0) target = $region17
    $region16: #{tpu_custom_call.1} parent=1 // pred_region
      %28 = dma.done [#allocation3], 2048
    $region17: #{tpu_custom_call.1} parent=1 // pred_fallthru
      _
    %v29 = vld [vmem:[#allocation2] sm:$0xff]
    %v30 = vld [vmem:[#allocation2 + $0x8] sm:$0xff]
    %v31 = vld [vmem:[#allocation2 + $0x10] sm:$0xff]
    %v32 = vld [vmem:[#allocation2 + $0x18] sm:$0xff]
    %v33 = vld [vmem:[#allocation2 + $0x20] sm:$0xff]
    %v34 = vld [vmem:[#allocation2 + $0x28] sm:$0xff]
    %v35 = vld [vmem:[#allocation2 + $0x30] sm:$0xff]
    %v36 = vld [vmem:[#allocation2 + $0x38] sm:$0xff]
    %v37 = vld [vmem:[#allocation2 + $0x40] sm:$0xff]
    %v38 = vld [vmem:[#allocation2 + $0x48] sm:$0xff]
    %v39 = vld [vmem:[#allocation2 + $0x50] sm:$0xff]
    %v40 = vld [vmem:[#allocation2 + $0x58] sm:$0xff]
    %v41 = vld [vmem:[#allocation2 + $0x60] sm:$0xff]
    %v42 = vld [vmem:[#allocation2 + $0x68] sm:$0xff]
    %v43 = vld [vmem:[#allocation2 + $0x70] sm:$0xff]
    %v44 = vld [vmem:[#allocation2 + $0x78] sm:$0xff]
    %v45 = vadd.f32 %v29, %v30
    %46 = vadd.xlane.f32.xlu0 %v45
    %v47 = vpop.xlane.xlu0 %46
    %v48 = vadd.f32 %v31, %v32
    %49 = vadd.xlane.f32.xlu0 %v48
    %v50 = vpop.xlane.xlu0 %49
    %v51 = vadd.f32 %v33, %v34
    %52 = vadd.xlane.f32.xlu0 %v51
    %v53 = vpop.xlane.xlu0 %52
    %v54 = vadd.f32 %v35, %v36
    %55 = vadd.xlane.f32.xlu0 %v54
    %v56 = vpop.xlane.xlu0 %55
    %v57 = vadd.f32 %v37, %v38
    %58 = vadd.xlane.f32.xlu0 %v57
    %v59 = vpop.xlane.xlu0 %58
    %v60 = vadd.f32 %v39, %v40
    %61 = vadd.xlane.f32.xlu0 %v60
    %v62 = vpop.xlane.xlu0 %61
    %v63 = vadd.f32 %v41, %v42
    %64 = vadd.xlane.f32.xlu0 %v63
    %v65 = vpop.xlane.xlu0 %64
    %v66 = vadd.f32 %v43, %v44
    %67 = vadd.xlane.f32.xlu0 %v66
    %v68 = vpop.xlane.xlu0 %67
    %v69 = vrcp.pop 256.0
    %v70 = vmul.f32 %v47, %v69
    %v71 = vmul.f32 %v50, %v69
    %v72 = vmul.f32 %v53, %v69
    %v73 = vmul.f32 %v56, %v69
    %v74 = vmul.f32 %v59, %v69
    %v75 = vmul.f32 %v62, %v69
    %v76 = vmul.f32 %v65, %v69
    %v77 = vmul.f32 %v68, %v69
    %v78 = vld [vmem:[%s1] sm:$0xff]
    %v79 = vld [vmem:[%s1 + $0x8] sm:$0xff]
    %v80 = vld [vmem:[%s1 + $0x10] sm:$0xff]
    %v81 = vld [vmem:[%s1 + $0x18] sm:$0xff]
    %v90 = vlaneseq
    %v91 = vand.u32 %v90, 127
    %v92 = vlaneseq
    %v93 = vshrl.u32 %v92, 7
    %v94 = vsub.s32 %v91, %v93
    %v95 = vrot.slane %v70, %v94
    %v96 = vadd.s32 %v91, 4294967288
    %v97 = vlaneseq
    %v98 = vshrl.u32 %v97, 7
    %v99 = vsub.s32 %v96, %v98
    %v100 = vrot.slane %v71, %v99
    %vm101 = vcmask 130112
    %v102 = vsel %vm101, %v100, %v95
    %v103 = vadd.s32 %v91, 4294967280
    %v104 = vlaneseq
    %v105 = vshrl.u32 %v104, 7
    %v106 = vsub.s32 %v103, %v105
    %v107 = vrot.slane %v72, %v106
    %vm108 = vcmask 195712
    %v109 = vsel %vm108, %v107, %v102
    %v110 = vadd.s32 %v91, 4294967272
    %v111 = vlaneseq
    %v112 = vshrl.u32 %v111, 7
    %v113 = vsub.s32 %v110, %v112
    %v114 = vrot.slane %v73, %v113
    %vm115 = vcmask 261312
    %v116 = vsel %vm115, %v114, %v109
    %v117 = vlaneseq
    %v118 = vshrl.u32 %v117, 7
    %v119 = vsub.s32 %v91, %v118
    %v120 = vrot.slane %v74, %v119
    %v121 = vlaneseq
    %v122 = vshrl.u32 %v121, 7
    %v123 = vsub.s32 %v96, %v122
    %v124 = vrot.slane %v75, %v123
    %v125 = vsel %vm101, %v124, %v120
    %v126 = vlaneseq
    %v127 = vshrl.u32 %v126, 7
    %v128 = vsub.s32 %v103, %v127
    %v129 = vrot.slane %v76, %v128
    %v130 = vsel %vm108, %v129, %v125
    %v131 = vlaneseq
    %v132 = vshrl.u32 %v131, 7
    %v133 = vsub.s32 %v110, %v132
    %v134 = vrot.slane %v77, %v133
    %v135 = vsel %vm115, %v134, %v130
    %vm136 = vcmask 1041409
    %v137 = vsel %vm136, %v135, %v116
    %vm138 = vcmask 261120
    %v139 = vsel %vm138, %v137, 0
    %141 = vmatprep.subr.mxu0 0.0
    %142 = vmatpush1.msra.mxu0 %v78
    %143 = vmatprep.subr.mxu0 0.0
    %144 = vmatpush1.msra.mxu0 %v79
    %145 = vmatprep.subr.mxu0 0.0
    %146 = vmatpush1.msra.mxu0 %v80
    %147 = vmatprep.subr.mxu0 0.0
    %148 = vmatpush1.msra.mxu0 %v81
    %149 = vmatprep.subr.mxu0 0.0
    %150 = vmatpush1.msra.mxu0 0.0
    %151 = vmatprep.subr.mxu0 0.0
    %152 = vmatpush1.msra.mxu0 0.0
    %153 = vmatprep.subr.mxu0 0.0
    %154 = vmatpush1.msra.mxu0 0.0
    %155 = vmatprep.subr.mxu0 0.0
    %156 = vmatpush1.msra.mxu0 0.0
    %157 = vmatprep.subr.mxu0 0.0
    %158 = vmatpush1.msra.mxu0 0.0
    %159 = vmatprep.subr.mxu0 0.0
    %160 = vmatpush1.msra.mxu0 0.0
    %161 = vmatprep.subr.mxu0 0.0
    %162 = vmatpush1.msra.mxu0 0.0
    %163 = vmatprep.subr.mxu0 0.0
    %164 = vmatpush1.msra.mxu0 0.0
    %165 = vmatprep.subr.mxu0 0.0
    %166 = vmatpush1.msra.mxu0 0.0
    %167 = vmatprep.subr.mxu0 0.0
    %168 = vmatpush1.msra.mxu0 0.0
    %169 = vmatprep.subr.mxu0 0.0
    %170 = vmatpush1.msra.mxu0 0.0
    %171 = vmatprep.subr.mxu0 0.0
    %172 = vmatpush1.msra.mxu0 0.0
    %173 = vmatprep.subr.mxu0 0.0
    %174 = vmatpush1.msra.mxu0 0.0
    %175 = vmatprep.subr.mxu0 0.0
    %176 = vmatpush1.msra.mxu0 0.0
    %177 = vmatprep.subr.mxu0 0.0
    %178 = vmatpush1.msra.mxu0 0.0
    %179 = vmatprep.subr.mxu0 0.0
    %180 = vmatpush1.msra.mxu0 0.0
    %181 = vmatprep.subr.mxu0 0.0
    %182 = vmatpush1.msra.mxu0 0.0
    %183 = vmatprep.subr.mxu0 0.0
    %184 = vmatpush1.msra.mxu0 0.0
    %185 = vmatprep.subr.mxu0 0.0
    %186 = vmatpush1.msra.mxu0 0.0
    %187 = vmatprep.subr.mxu0 0.0
    %188 = vmatpush1.msra.mxu0 0.0
    %189 = vmatprep.subr.mxu0 0.0
    %190 = vmatpush1.msra.mxu0 0.0
    %191 = vmatprep.subr.mxu0 0.0
    %192 = vmatpush1.msra.mxu0 0.0
    %193 = vmatprep.subr.mxu0 0.0
    %194 = vmatpush1.msra.mxu0 0.0
    %195 = vmatprep.subr.mxu0 0.0
    %196 = vmatpush1.msra.mxu0 0.0
    %197 = vmatprep.subr.mxu0 0.0
    %198 = vmatpush1.msra.mxu0 0.0
    %199 = vmatprep.subr.mxu0 0.0
    %200 = vmatpush1.msra.mxu0 0.0
    %201 = vmatprep.subr.mxu0 0.0
    %202 = vmatpush1.msra.mxu0 0.0
    %203 = vmatprep.subr.mxu0 0.0
    %204 = vmatpush1.msra.mxu0 0.0
    %205 = vmatprep.mubr.f32.mxu0 0.0
    %206 = vmatmul.mubr.f32.gmra.mrb[0].mxu0 %v139
    %v207 = vpop.f32.mrb[0].mxu0
    %v208 = vadd.f32 0.0, %v207
    %v209 = vpop.f32.mrb[0].mxu0
    %210 = vdwg.mxu0
    %v211 = vmax.f32 %v208, 0.0
    %v212 = vld [vmem:[%s2] sm:$0x3]
    %vm213 = vcmask 15360
    %v215 = vsel %vm213, %v211, 0
    %vm217 = vcmask 1041408
    %v219 = vsel %vm217, %v212, 0
    %221 = vmatprep.subr.mxu0 0.0
    %222 = vmatpush1.msra.mxu0 %v219
    %223 = vmatprep.subr.mxu0 0.0
    %224 = vmatpush1.msra.mxu0 0.0
    %225 = vmatprep.subr.mxu0 0.0
    %226 = vmatpush1.msra.mxu0 0.0
    %227 = vmatprep.subr.mxu0 0.0
    %228 = vmatpush1.msra.mxu0 0.0
    %229 = vmatprep.subr.mxu0 0.0
    %230 = vmatpush1.msra.mxu0 0.0
    %231 = vmatprep.subr.mxu0 0.0
    %232 = vmatpush1.msra.mxu0 0.0
    %233 = vmatprep.subr.mxu0 0.0
    %234 = vmatpush1.msra.mxu0 0.0
    %235 = vmatprep.subr.mxu0 0.0
    %236 = vmatpush1.msra.mxu0 0.0
    %237 = vmatprep.subr.mxu0 0.0
    %238 = vmatpush1.msra.mxu0 0.0
    %239 = vmatprep.subr.mxu0 0.0
    %240 = vmatpush1.msra.mxu0 0.0
    %241 = vmatprep.subr.mxu0 0.0
    %242 = vmatpush1.msra.mxu0 0.0
    %243 = vmatprep.subr.mxu0 0.0
    %244 = vmatpush1.msra.mxu0 0.0
    %245 = vmatprep.subr.mxu0 0.0
    %246 = vmatpush1.msra.mxu0 0.0
    %247 = vmatprep.subr.mxu0 0.0
    %248 = vmatpush1.msra.mxu0 0.0
    %249 = vmatprep.subr.mxu0 0.0
    %250 = vmatpush1.msra.mxu0 0.0
    %251 = vmatprep.subr.mxu0 0.0
    %252 = vmatpush1.msra.mxu0 0.0
    %253 = vmatprep.subr.mxu0 0.0
    %254 = vmatpush1.msra.mxu0 0.0
    %255 = vmatprep.subr.mxu0 0.0
    %256 = vmatpush1.msra.mxu0 0.0
    %257 = vmatprep.subr.mxu0 0.0
    %258 = vmatpush1.msra.mxu0 0.0
    %259 = vmatprep.subr.mxu0 0.0
    %260 = vmatpush1.msra.mxu0 0.0
    %261 = vmatprep.subr.mxu0 0.0
    %262 = vmatpush1.msra.mxu0 0.0
    %263 = vmatprep.subr.mxu0 0.0
    %264 = vmatpush1.msra.mxu0 0.0
    %265 = vmatprep.subr.mxu0 0.0
    %266 = vmatpush1.msra.mxu0 0.0
    %267 = vmatprep.subr.mxu0 0.0
    %268 = vmatpush1.msra.mxu0 0.0
    %269 = vmatprep.subr.mxu0 0.0
    %270 = vmatpush1.msra.mxu0 0.0
    %271 = vmatprep.subr.mxu0 0.0
    %272 = vmatpush1.msra.mxu0 0.0
    %273 = vmatprep.subr.mxu0 0.0
    %274 = vmatpush1.msra.mxu0 0.0
    %275 = vmatprep.subr.mxu0 0.0
    %276 = vmatpush1.msra.mxu0 0.0
    %277 = vmatprep.subr.mxu0 0.0
    %278 = vmatpush1.msra.mxu0 0.0
    %279 = vmatprep.subr.mxu0 0.0
    %280 = vmatpush1.msra.mxu0 0.0
    %281 = vmatprep.subr.mxu0 0.0
    %282 = vmatpush1.msra.mxu0 0.0
    %283 = vmatprep.subr.mxu0 0.0
    %284 = vmatpush1.msra.mxu0 0.0
    %285 = vmatprep.mubr.f32.mxu0 0.0
    %286 = vmatmul.mubr.f32.gmra.mrb[0].mxu0 %v215
    %v287 = vpop.f32.mrb[0].mxu0
    %v288 = vadd.f32 0.0, %v287
    %v289 = vpop.f32.mrb[0].mxu0
    %290 = vdwg.mxu0
    %v291 = vxor.u32 %v288, 2147483648
    %v292 = vmul.f32 %v291, 1.442695
    %v293 = vpow.pop %v292
    %v294 = vadd.f32 %v293, 1.0
    %v295 = vrcp.pop %v294
    %v296 = vmul.f32 1.0, %v295
    %v297 = vlaneseq
    %v298 = vshrl.u32 %v297, 7
    %v299 = vsub.s32 0, %v298
    %v300 = vrot.slane %v296, %v299
    %302 = vbcast.lane.b32.xlu0 %v300, 256
    %v303 = vpop.permute.xlu0 %302
    %s305 = sor.u32 256, 8
    %306 = vbcast.lane.b32.xlu0 %v300, %s305
    %v307 = vpop.permute.xlu0 %306
    %s309 = sor.u32 256, 16
    %310 = vbcast.lane.b32.xlu0 %v300, %s309
    %v311 = vpop.permute.xlu0 %310
    %s313 = sor.u32 256, 24
    %314 = vbcast.lane.b32.xlu0 %v300, %s313
    %v315 = vpop.permute.xlu0 %314
    %v316 = vlaneseq
    %v317 = vshrl.u32 %v316, 7
    %v318 = vsub.s32 1, %v317
    %v319 = vrot.slane %v296, %v318
    %321 = vbcast.lane.b32.xlu0 %v319, 256
    %v322 = vpop.permute.xlu0 %321
    %s324 = sor.u32 256, 8
    %325 = vbcast.lane.b32.xlu0 %v319, %s324
    %v326 = vpop.permute.xlu0 %325
    %s328 = sor.u32 256, 16
    %329 = vbcast.lane.b32.xlu0 %v319, %s328
    %v330 = vpop.permute.xlu0 %329
    %s332 = sor.u32 256, 24
    %333 = vbcast.lane.b32.xlu0 %v319, %s332
    %v334 = vpop.permute.xlu0 %333
    %v335 = vmul.f32 %v29, %v303
    %v336 = vmul.f32 %v30, %v303
    %v337 = vmul.f32 %v31, %v307
    %v338 = vmul.f32 %v32, %v307
    %v339 = vmul.f32 %v33, %v311
    %v340 = vmul.f32 %v34, %v311
    %v341 = vmul.f32 %v35, %v315
    %v342 = vmul.f32 %v36, %v315
    %v343 = vmul.f32 %v37, %v322
    %v344 = vmul.f32 %v38, %v322
    %v345 = vmul.f32 %v39, %v326
    %v346 = vmul.f32 %v40, %v326
    %v347 = vmul.f32 %v41, %v330
    %v348 = vmul.f32 %v42, %v330
    %v349 = vmul.f32 %v43, %v334
    %v350 = vmul.f32 %v44, %v334
    %351 = vst [vmem:[#allocation5] sm:$0xff] %v335
    %352 = vst [vmem:[#allocation5 + $0x8] sm:$0xff] %v336
    %353 = vst [vmem:[#allocation5 + $0x10] sm:$0xff] %v337
    %354 = vst [vmem:[#allocation5 + $0x18] sm:$0xff] %v338
    %355 = vst [vmem:[#allocation5 + $0x20] sm:$0xff] %v339
    %356 = vst [vmem:[#allocation5 + $0x28] sm:$0xff] %v340
    %357 = vst [vmem:[#allocation5 + $0x30] sm:$0xff] %v341
    %358 = vst [vmem:[#allocation5 + $0x38] sm:$0xff] %v342
    %359 = vst [vmem:[#allocation5 + $0x40] sm:$0xff] %v343
    %360 = vst [vmem:[#allocation5 + $0x48] sm:$0xff] %v344
    %361 = vst [vmem:[#allocation5 + $0x50] sm:$0xff] %v345
    %362 = vst [vmem:[#allocation5 + $0x58] sm:$0xff] %v346
    %363 = vst [vmem:[#allocation5 + $0x60] sm:$0xff] %v347
    %364 = vst [vmem:[#allocation5 + $0x68] sm:$0xff] %v348
    %365 = vst [vmem:[#allocation5 + $0x70] sm:$0xff] %v349
    %366 = vst [vmem:[#allocation5 + $0x78] sm:$0xff] %v350
    // Predicated region
    $region18: #{tpu_custom_call.1} parent=1 // pred_check
      _
    $region19: #{tpu_custom_call.1} parent=1 // pred_check_branch
      %368 = sbr.rel (0) target = $region21
    $region20: #{tpu_custom_call.1} parent=1 // pred_region
      %s370 = ssub.s32 2048, 2048
      %371 = vsyncadd [#allocation4], %s370
      %s372 = sshll.u32 [#allocation5], 4
      %s373 = int_to_ptr.vmem [resolvable:$true] %s372
      %378 = dma.vmem_to_hbm [thread:$0]  %s373, 2048, %s3, [#allocation4], 256, 256, 16
    $region21: #{tpu_custom_call.1} parent=1 // pred_fallthru
      _
    // Predicated region
    $region22: #{tpu_custom_call.1} parent=1 // pred_check
      _
    $region23: #{tpu_custom_call.1} parent=1 // pred_check_branch
      %380 = sbr.rel (0) target = $region25
    $region24: #{tpu_custom_call.1} parent=1 // pred_region
      %381 = dma.done [#allocation4], 2048
    $region25: #{tpu_custom_call.1} parent=1 // pred_fallthru
      _
    %382 = vsyncpa [#allocation3], 1
    %383 = vsyncpa [#allocation4], 1

</llo_original>
